<compile_context>
chip_gen: v7x
topology: tpu7x:2x2x1
jax: 0.10.0
libtpu: 0.0.40
codegen_flags: <defaults>
</compile_context>

<pallas_src>
import jax
import jax.numpy as jnp
from jax.experimental import pallas as pl
from jax.experimental.pallas import tpu as pltpu


def _round_up(n, m):
    return ((n + m - 1) // m) * m


def _pick_batch_tile(B, block_batch):
    """Pick the batch tile TB.

    TB is a multiple of 16 (bf16 sublane packing; f32 needs only 8) and is
    capped near ceil(B/2) so there are at least 2 — ideally an even number of —
    grid steps for v7x's two TensorCores.  With the default block_batch=512,
    large-B tiles stay 128/256-aligned (full MXU passes on v5e/v6e/v7x).
    """
    grain = 16
    block_batch = _round_up(max(block_batch, grain), grain)
    tb = min(block_batch, _round_up(pl.cdiv(B, 2), grain))
    n = pl.cdiv(B, tb)
    if n > 2 and n % 2 == 1:
        tb_alt = min(block_batch, _round_up(pl.cdiv(B, n + 1), grain))
        if pl.cdiv(B, tb_alt) % 2 == 0:
            tb = tb_alt
    return tb


def critic_kernel(x_ref, a_ref,
                  w1_ref, b1_ref,
                  w2h_ref, w2a_ref, b2_ref,
                  w3_ref, b3_ref,
                  w4r_ref, b4_ref,
                  out_ref):
    # MXU operands carry the stored weight dtype (bf16 by default, f32 for the
    # debug path).  Accumulation is always f32.  Default MXU precision is used;
    # if bit-exact f32 parity with the PyTorch reference is required, run the
    # f32 path with precision=jax.lax.Precision.HIGHEST (large MXU cost).
    x = x_ref[...]          # (TB, S)
    a = a_ref[...]          # (TB, A)

    # fc1 + relu  (f32 accumulate, f32 bias/ReLU)
    h1 = jnp.dot(x, w1_ref[...], preferred_element_type=jnp.float32) + b1_ref[...]
    h1 = jnp.maximum(h1, 0.0)

    # fc2 on concat([h1, a], 1) + relu  == exact split matmul (no concat).
    # TODO(synk): optional fp8 operands for fc2/fc3 on v7x (accuracy-sensitive).
    h2 = (jnp.dot(h1.astype(w2h_ref.dtype), w2h_ref[...],
                  preferred_element_type=jnp.float32)
          + jnp.dot(a, w2a_ref[...], preferred_element_type=jnp.float32)
          + b2_ref[...])
    h2 = jnp.maximum(h2, 0.0)

    # fc3 + relu
    h3 = jnp.dot(h2.astype(w3_ref.dtype), w3_ref[...],
                 preferred_element_type=jnp.float32) + b3_ref[...]
    h3 = jnp.maximum(h3, 0.0)

    # fc4 (N=1): VPU multiply + XLU lane reduction instead of an MXU matmul.
    # w4r_ref is (1, hidden3) f32, b4_ref is (1, 1) f32.
    out = jnp.sum(h3 * w4r_ref[...], axis=-1, keepdims=True) + b4_ref[...]
    out_ref[...] = out.astype(out_ref.dtype)


def critic_forward(x, a, params, *, block_batch=512, weight_pipeline_mode=None):
    """x: (B, state_num) f32, a: (B, action_num) f32 -> (B, 1) f32.

    params: dict from init_params() / cast_matmul_weights().  Matmul weights
    may be bf16 (default, native full-rate MXU path) or f32 (debug/reference);
    activations are cast to the weight dtype, accumulation stays f32.
    weight_pipeline_mode: e.g. pl.Buffered(1) to single-buffer the resident
    weights (halves their VMEM footprint; useful on v7x with large hidden).
    """
    w1, b1 = params["w1"], params["b1"]
    w2h, w2a, b2 = params["w2h"], params["w2a"], params["b2"]
    w3, b3 = params["w3"], params["b3"]
    w4r, b4 = params["w4r"], params["b4"]

    B = x.shape[0]
    TB = _pick_batch_tile(B, block_batch)
    B_pad = _round_up(B, TB)
    if B_pad != B:
        # Rows are independent through Linear+ReLU; pad rows are sliced off
        # below.  (The pad is tiny; partial-final-block handling could remove
        # it entirely if the inputs ever become large.)
        x = jnp.pad(x, ((0, B_pad - B), (0, 0)))
        a = jnp.pad(a, ((0, B_pad - B), (0, 0)))

    mxu_dtype = w1.dtype                 # bf16 by default
    x = x.astype(mxu_dtype)
    a = a.astype(mxu_dtype)

    num_tiles = B_pad // TB
    weights = (w1, b1, w2h, w2a, b2, w3, b3, w4r, b4)

    def tiled(arr):                      # batch-streamed activations
        return pl.BlockSpec((TB, arr.shape[1]), lambda i: (i, 0))

    def resident(arr):                   # weights/biases: fetched once, stay in VMEM
        if weight_pipeline_mode is None:
            return pl.BlockSpec(arr.shape, lambda i: (0, 0))
        return pl.BlockSpec(arr.shape, lambda i: (0, 0),
                            pipeline_mode=weight_pipeline_mode)

    # Advisory cost estimate so XLA schedules this custom call well inside the
    # full DDPG training graph.
    S, A = x.shape[1], a.shape[1]
    H1, H2, H3 = w1.shape[1], w2h.shape[1], w3.shape[1]
    flops = 2 * B_pad * (S * H1 + (H1 + A) * H2 + H2 * H3 + H3)
    bytes_accessed = (int(x.size) * x.dtype.itemsize
                      + int(a.size) * a.dtype.itemsize
                      + sum(int(w.size) * w.dtype.itemsize for w in weights)
                      + B_pad * 4)

    out = pl.pallas_call(
        critic_kernel,
        out_shape=jax.ShapeDtypeStruct((B_pad, 1), jnp.float32),
        grid_spec=pl.GridSpec(
            grid=(num_tiles,),
            in_specs=[tiled(x), tiled(a)] + [resident(w) for w in weights],
            out_specs=pl.BlockSpec((TB, 1), lambda i: (i, 0)),
        ),
        compiler_params=pltpu.CompilerParams(
            dimension_semantics=("parallel",),   # v7x: 2 TCs split the batch tiles
        ),
        cost_estimate=pl.CostEstimate(
            flops=int(flops),
            transcendentals=0,
            bytes_accessed=int(bytes_accessed)),
    )(x, a, *weights)
    return out[:B]


def cast_matmul_weights(params, dtype):
    """Cast only the MXU-operand weights; biases and the fc4 row stay f32."""
    p = dict(params)
    for k in ("w1", "w2h", "w2a", "w3"):
        p[k] = params[k].astype(dtype)
    return p


def init_params(key, state_num, action_num, hidden1=512, hidden2=512, hidden3=512,
                matmul_dtype=jnp.bfloat16):
    """Init mimicking nn.Linear defaults (uniform +/- 1/sqrt(fan_in)).

    Per-call reshaping / slicing is hoisted here:
      * fc2 weight is stored pre-split into (w2h, w2a),
      * biases are stored as (1, N) f32 rows,
      * fc4 weight is stored pre-transposed as a (1, hidden3) f32 row.
    Matmul weights are stored in `matmul_dtype` (bf16 default = native MXU path;
    pass jnp.float32 for the debug/reference path).
    """
    def linear(key, fan_in, fan_out):
        kw, kb = jax.random.split(key)
        bound = 1.0 / jnp.sqrt(fan_in)
        w = jax.random.uniform(kw, (fan_in, fan_out), jnp.float32, -bound, bound)
        b = jax.random.uniform(kb, (fan_out,), jnp.float32, -bound, bound)
        return w, b

    k1, k2, k3, k4 = jax.random.split(key, 4)
    w1, b1 = linear(k1, state_num, hidden1)
    w2, b2 = linear(k2, hidden1 + action_num, hidden2)
    w3, b3 = linear(k3, hidden2, hidden3)
    w4, b4 = linear(k4, hidden3, 1)

    params = dict(
        w1=w1, b1=b1.reshape(1, -1),
        w2h=w2[:hidden1, :], w2a=w2[hidden1:, :], b2=b2.reshape(1, -1),
        w3=w3, b3=b3.reshape(1, -1),
        w4r=w4.T,                       # (1, hidden3)
        b4=b4.reshape(1, 1),
    )
    return cast_matmul_weights(params, matmul_dtype)


def critic_ref(x, a, p):
    """Pure-JAX reference matching the PyTorch forward (f32 math)."""
    h1 = jax.nn.relu(x @ p["w1"].astype(jnp.float32) + p["b1"])
    h2 = jax.nn.relu(h1 @ p["w2h"].astype(jnp.float32)
                     + a @ p["w2a"].astype(jnp.float32) + p["b2"])
    h3 = jax.nn.relu(h2 @ p["w3"].astype(jnp.float32) + p["b3"])
    return h3 @ p["w4r"].T + p["b4"]


if __name__ == "__main__":
    key = jax.random.PRNGKey(0)
    k_params, k_x, k_a = jax.random.split(key, 3)

    batch, state_num, action_num = 20, 16, 4
    hidden = 128

    # f32 master params (debug/reference path) + the default bf16 fast path.
    params_f32 = init_params(k_params, state_num, action_num,
                             hidden, hidden, hidden, matmul_dtype=jnp.float32)
    params_bf16 = cast_matmul_weights(params_f32, jnp.bfloat16)

    x = jax.random.normal(k_x, (batch, state_num), jnp.float32)
    a = jax.random.normal(k_a, (batch, action_num), jnp.float32)

    ref = critic_ref(x, a, params_f32)

    # Default path: bf16 MXU operands, f32 accumulation.  The tile picker gives
    # TB=16 -> 2 grid steps (batch padded 20 -> 32), exercising the pipeline.
    out_bf16 = jax.block_until_ready(critic_forward(x, a, params_bf16))
    assert out_bf16.shape == (batch, 1)
    assert jnp.allclose(out_bf16, ref, atol=5e-2, rtol=5e-2), (out_bf16, ref)

    # f32 debug/reference path (tight tolerance; default MXU precision).
    out_f32 = jax.block_until_ready(critic_forward(x, a, params_f32))
    assert out_f32.shape == (batch, 1)
    assert jnp.allclose(out_f32, ref, atol=1e-4, rtol=1e-4), (out_f32, ref)

    print("KERNEL_OK")
</pallas_src>

<mosaic_0001>
module attributes {stable_mosaic.version = 11 : i64} {
  func.func @critic_kernel(%arg0: i32, %arg1: memref<16x16xbf16, #tpu.memory_space<vmem>>, %arg2: memref<16x4xbf16, #tpu.memory_space<vmem>>, %arg3: memref<16x128xbf16, #tpu.memory_space<vmem>>, %arg4: memref<1x128xf32, #tpu.memory_space<vmem>>, %arg5: memref<128x128xbf16, #tpu.memory_space<vmem>>, %arg6: memref<4x128xbf16, #tpu.memory_space<vmem>>, %arg7: memref<1x128xf32, #tpu.memory_space<vmem>>, %arg8: memref<128x128xbf16, #tpu.memory_space<vmem>>, %arg9: memref<1x128xf32, #tpu.memory_space<vmem>>, %arg10: memref<1x128xf32, #tpu.memory_space<vmem>>, %arg11: memref<1x1xf32, #tpu.memory_space<vmem>>, %arg12: memref<16x1xf32, #tpu.memory_space<vmem>>) attributes {dimension_semantics = [#tpu.dimension_semantics<parallel>], iteration_bounds = array<i64: 2>, scalar_prefetch = 0 : i64, scratch_operands = 0 : i64, tpu.core_type = #tpu.core_type<tc>, window_params = [{transform_indices = @transform_0, window_bounds = array<i64: 16, 16>}, {transform_indices = @transform_1, window_bounds = array<i64: 16, 4>}, {pipeline_mode = #tpu.pipeline_mode<synchronous>, transform_indices = @transform_2, window_bounds = array<i64: 16, 128>}, {pipeline_mode = #tpu.pipeline_mode<synchronous>, transform_indices = @transform_3, window_bounds = array<i64: 1, 128>}, {pipeline_mode = #tpu.pipeline_mode<synchronous>, transform_indices = @transform_4, window_bounds = array<i64: 128, 128>}, {pipeline_mode = #tpu.pipeline_mode<synchronous>, transform_indices = @transform_5, window_bounds = array<i64: 4, 128>}, {pipeline_mode = #tpu.pipeline_mode<synchronous>, transform_indices = @transform_6, window_bounds = array<i64: 1, 128>}, {pipeline_mode = #tpu.pipeline_mode<synchronous>, transform_indices = @transform_7, window_bounds = array<i64: 128, 128>}, {pipeline_mode = #tpu.pipeline_mode<synchronous>, transform_indices = @transform_8, window_bounds = array<i64: 1, 128>}, {pipeline_mode = #tpu.pipeline_mode<synchronous>, transform_indices = @transform_9, window_bounds = array<i64: 1, 128>}, {pipeline_mode = #tpu.pipeline_mode<synchronous>, transform_indices = @transform_10, window_bounds = array<i64: 1, 1>}, {transform_indices = @transform_11, window_bounds = array<i64: 16, 1>}]} {
    %c0 = arith.constant 0 : index
    %c0_0 = arith.constant 0 : index
    %0 = vector.load %arg1[%c0, %c0_0] : memref<16x16xbf16, #tpu.memory_space<vmem>>, vector<16x16xbf16>
    %c0_1 = arith.constant 0 : index
    %c0_2 = arith.constant 0 : index
    %1 = vector.load %arg2[%c0_1, %c0_2] : memref<16x4xbf16, #tpu.memory_space<vmem>>, vector<16x4xbf16>
    %c0_3 = arith.constant 0 : index
    %c0_4 = arith.constant 0 : index
    %2 = vector.load %arg3[%c0_3, %c0_4] : memref<16x128xbf16, #tpu.memory_space<vmem>>, vector<16x128xbf16>
    %cst = arith.constant dense<0.000000e+00> : vector<16x128xf32>
    %3 = tpu.matmul %0, %2, %cst {dimension_numbers = #tpu.dot_dimension_numbers<[1], [0], [0], [1], [0, 0, 1, 1], [], []>} : vector<16x16xbf16>, vector<16x128xbf16>, vector<16x128xf32> -> vector<16x128xf32>
    %c0_5 = arith.constant 0 : index
    %c0_6 = arith.constant 0 : index
    %4 = vector.load %arg4[%c0_5, %c0_6] : memref<1x128xf32, #tpu.memory_space<vmem>>, vector<1x128xf32>
    %5 = vector.broadcast %4 : vector<1x128xf32> to vector<16x128xf32>
    %6 = arith.addf %3, %5 : vector<16x128xf32>
    %cst_7 = arith.constant 0.000000e+00 : f32
    %7 = vector.broadcast %cst_7 : f32 to vector<16x128xf32>
    %8 = arith.maximumf %6, %7 : vector<16x128xf32>
    %9 = arith.truncf %8 : vector<16x128xf32> to vector<16x128xbf16>
    %c0_8 = arith.constant 0 : index
    %c0_9 = arith.constant 0 : index
    %10 = vector.load %arg5[%c0_8, %c0_9] : memref<128x128xbf16, #tpu.memory_space<vmem>>, vector<128x128xbf16>
    %cst_10 = arith.constant dense<0.000000e+00> : vector<16x128xf32>
    %11 = tpu.matmul %9, %10, %cst_10 {dimension_numbers = #tpu.dot_dimension_numbers<[1], [0], [0], [1], [0, 0, 1, 1], [], []>} : vector<16x128xbf16>, vector<128x128xbf16>, vector<16x128xf32> -> vector<16x128xf32>
    %c0_11 = arith.constant 0 : index
    %c0_12 = arith.constant 0 : index
    %12 = vector.load %arg6[%c0_11, %c0_12] : memref<4x128xbf16, #tpu.memory_space<vmem>>, vector<4x128xbf16>
    %cst_13 = arith.constant dense<0.000000e+00> : vector<16x128xf32>
    %13 = tpu.matmul %1, %12, %cst_13 {dimension_numbers = #tpu.dot_dimension_numbers<[1], [0], [0], [1], [0, 0, 1, 1], [], []>} : vector<16x4xbf16>, vector<4x128xbf16>, vector<16x128xf32> -> vector<16x128xf32>
    %14 = arith.addf %11, %13 : vector<16x128xf32>
    %c0_14 = arith.constant 0 : index
    %c0_15 = arith.constant 0 : index
    %15 = vector.load %arg7[%c0_14, %c0_15] : memref<1x128xf32, #tpu.memory_space<vmem>>, vector<1x128xf32>
    %16 = vector.broadcast %15 : vector<1x128xf32> to vector<16x128xf32>
    %17 = arith.addf %14, %16 : vector<16x128xf32>
    %cst_16 = arith.constant 0.000000e+00 : f32
    %18 = vector.broadcast %cst_16 : f32 to vector<16x128xf32>
    %19 = arith.maximumf %17, %18 : vector<16x128xf32>
    %20 = arith.truncf %19 : vector<16x128xf32> to vector<16x128xbf16>
    %c0_17 = arith.constant 0 : index
    %c0_18 = arith.constant 0 : index
    %21 = vector.load %arg8[%c0_17, %c0_18] : memref<128x128xbf16, #tpu.memory_space<vmem>>, vector<128x128xbf16>
    %cst_19 = arith.constant dense<0.000000e+00> : vector<16x128xf32>
    %22 = tpu.matmul %20, %21, %cst_19 {dimension_numbers = #tpu.dot_dimension_numbers<[1], [0], [0], [1], [0, 0, 1, 1], [], []>} : vector<16x128xbf16>, vector<128x128xbf16>, vector<16x128xf32> -> vector<16x128xf32>
    %c0_20 = arith.constant 0 : index
    %c0_21 = arith.constant 0 : index
    %23 = vector.load %arg9[%c0_20, %c0_21] : memref<1x128xf32, #tpu.memory_space<vmem>>, vector<1x128xf32>
    %24 = vector.broadcast %23 : vector<1x128xf32> to vector<16x128xf32>
    %25 = arith.addf %22, %24 : vector<16x128xf32>
    %cst_22 = arith.constant 0.000000e+00 : f32
    %26 = vector.broadcast %cst_22 : f32 to vector<16x128xf32>
    %27 = arith.maximumf %25, %26 : vector<16x128xf32>
    %c0_23 = arith.constant 0 : index
    %c0_24 = arith.constant 0 : index
    %28 = vector.load %arg10[%c0_23, %c0_24] : memref<1x128xf32, #tpu.memory_space<vmem>>, vector<1x128xf32>
    %29 = vector.broadcast %28 : vector<1x128xf32> to vector<16x128xf32>
    %30 = arith.mulf %27, %29 : vector<16x128xf32>
    %cst_25 = arith.constant dense<0.000000e+00> : vector<16xf32>
    %31 = vector.multi_reduction <add>, %30, %cst_25 [1] : vector<16x128xf32> to vector<16xf32>
    %32 = vector.shape_cast %31 : vector<16xf32> to vector<16x1xf32>
    %c0_26 = arith.constant 0 : index
    %c0_27 = arith.constant 0 : index
    %33 = vector.load %arg11[%c0_26, %c0_27] : memref<1x1xf32, #tpu.memory_space<vmem>>, vector<1x1xf32>
    %34 = vector.broadcast %33 : vector<1x1xf32> to vector<16x1xf32>
    %35 = arith.addf %32, %34 : vector<16x1xf32>
    %c0_28 = arith.constant 0 : index
    %c0_29 = arith.constant 0 : index
    %36 = vector.load %arg12[%c0_28, %c0_29] : memref<16x1xf32, #tpu.memory_space<vmem>>, vector<16x1xf32>
    tpu.vector_store %arg12[%c0_28, %c0_29], %35 {strides = array<i32>} : memref<16x1xf32, #tpu.memory_space<vmem>>, vector<16x1xf32>,
    return
  }
  func.func @transform_0(%arg0: i32) -> (i32, i32) {
    %c0_i32 = arith.constant 0 : i32
    %c0_i32_0 = arith.constant 0 : i32
    return %arg0, %c0_i32 : i32, i32
  }
  func.func @transform_1(%arg0: i32) -> (i32, i32) {
    %c0_i32 = arith.constant 0 : i32
    %c0_i32_0 = arith.constant 0 : i32
    return %arg0, %c0_i32 : i32, i32
  }
  func.func @transform_2(%arg0: i32) -> (i32, i32) {
    %c0_i32 = arith.constant 0 : i32
    %c0_i32_0 = arith.constant 0 : i32
    %c0_i32_1 = arith.constant 0 : i32
    return %c0_i32, %c0_i32_0 : i32, i32
  }
  func.func @transform_3(%arg0: i32) -> (i32, i32) {
    %c0_i32 = arith.constant 0 : i32
    %c0_i32_0 = arith.constant 0 : i32
    %c0_i32_1 = arith.constant 0 : i32
    return %c0_i32, %c0_i32_0 : i32, i32
  }
  func.func @transform_4(%arg0: i32) -> (i32, i32) {
    %c0_i32 = arith.constant 0 : i32
    %c0_i32_0 = arith.constant 0 : i32
    %c0_i32_1 = arith.constant 0 : i32
    return %c0_i32, %c0_i32_0 : i32, i32
  }
  func.func @transform_5(%arg0: i32) -> (i32, i32) {
    %c0_i32 = arith.constant 0 : i32
    %c0_i32_0 = arith.constant 0 : i32
    %c0_i32_1 = arith.constant 0 : i32
    return %c0_i32, %c0_i32_0 : i32, i32
  }
  func.func @transform_6(%arg0: i32) -> (i32, i32) {
    %c0_i32 = arith.constant 0 : i32
    %c0_i32_0 = arith.constant 0 : i32
    %c0_i32_1 = arith.constant 0 : i32
    return %c0_i32, %c0_i32_0 : i32, i32
  }
  func.func @transform_7(%arg0: i32) -> (i32, i32) {
    %c0_i32 = arith.constant 0 : i32
    %c0_i32_0 = arith.constant 0 : i32
    %c0_i32_1 = arith.constant 0 : i32
    return %c0_i32, %c0_i32_0 : i32, i32
  }
  func.func @transform_8(%arg0: i32) -> (i32, i32) {
    %c0_i32 = arith.constant 0 : i32
    %c0_i32_0 = arith.constant 0 : i32
    %c0_i32_1 = arith.constant 0 : i32
    return %c0_i32, %c0_i32_0 : i32, i32
  }
  func.func @transform_9(%arg0: i32) -> (i32, i32) {
    %c0_i32 = arith.constant 0 : i32
    %c0_i32_0 = arith.constant 0 : i32
    %c0_i32_1 = arith.constant 0 : i32
    return %c0_i32, %c0_i32_0 : i32, i32
  }
  func.func @transform_10(%arg0: i32) -> (i32, i32) {
    %c0_i32 = arith.constant 0 : i32
    %c0_i32_0 = arith.constant 0 : i32
    %c0_i32_1 = arith.constant 0 : i32
    return %c0_i32, %c0_i32_0 : i32, i32
  }
  func.func @transform_11(%arg0: i32) -> (i32, i32) {
    %c0_i32 = arith.constant 0 : i32
    %c0_i32_0 = arith.constant 0 : i32
    return %arg0, %c0_i32 : i32, i32
  }
}

</mosaic_0001>

<llo_original>
// kernel: tpu_custom_call.1
$region0: #{tpu_custom_call.1}
  #allocation0 [shape = 'u32[]', space=smem, size = 0x4, offset = 0x4, fixed_abs, tag = 'smem constant byte address 0x4 - core index']
  #allocation1 [shape = 'u32[144,128]{1,0:T(1,128)}', space=vmem, size = 0x12000, scoped, tag = 'internal scratch']
  #allocation2 [shape = 'f32[1,1]{1,0:T(1,128)S(1)}', space=vmem, size = 0x200, scoped, tag = 'scoped memory for tpu_custom_call.1']
  %s0 = inlined_call_operand.vmem [shape: bf16[32,16], index: 0, kind: input, shape index: {}]
  %s1 = inlined_call_operand.vmem [shape: bf16[32,4], index: 1, kind: input, shape index: {}]
  %s2 = inlined_call_operand.vmem [shape: bf16[16,128], index: 2, kind: input, shape index: {}]
  %s3 = inlined_call_operand.hbm [shape: f32[1,128], index: 3, kind: input, shape index: {}]
  %s4 = inlined_call_operand.hbm [shape: bf16[128,128], index: 4, kind: input, shape index: {}]
  %s5 = inlined_call_operand.hbm [shape: bf16[4,128], index: 5, kind: input, shape index: {}]
  %s6 = inlined_call_operand.hbm [shape: f32[1,128], index: 6, kind: input, shape index: {}]
  %s7 = inlined_call_operand.vmem [shape: bf16[128,128], index: 7, kind: input, shape index: {}]
  %s8 = inlined_call_operand.vmem [shape: f32[1,128], index: 8, kind: input, shape index: {}]
  %s9 = inlined_call_operand.vmem [shape: f32[1,128], index: 9, kind: input, shape index: {}]
  %s10 = inlined_call_operand.<no memory space> [shape: f32[1,1], index: 10, kind: input, shape index: {}]
  %s11 = inlined_call_operand.vmem [shape: f32[32,1], index: 11, kind: output, shape index: {}]
  %s12 = sld [smem:[#allocation0]]
  $region93: #{tpu_custom_call.1} parent=0
    _
  %s14 = ssub.s32 1, %s12
  %s15 = scalar_select 0, %s14, %s12
  %v16 = vstv %s10
  %17 = vst [vmem:[#allocation2] sm:$0x1] %v16
  $region1: #{tpu_custom_call.1} parent=0
    #allocation3 [shape = 'u8[512]{0}', space=vmem, size = 0x400, scoped, tag = 'input window, operand 3, single buffered']
    #allocation4 [shape = 's32[2]{0}', space=sflag, size = 0x8, scoped, tag = 'scoped memory for tpu_custom_call.1']
    #allocation5 [shape = 'u8[32768]{0}', space=vmem, size = 0x8000, scoped, tag = 'input window, operand 4, single buffered']
    #allocation6 [shape = 's32[1]{0}', space=sflag, size = 0x4, scoped, tag = 'scoped memory for tpu_custom_call.1']
    #allocation7 [shape = 'u8[1024]{0}', space=vmem, size = 0x400, scoped, tag = 'input window, operand 5, single buffered']
    #allocation8 [shape = 'u8[512]{0}', space=vmem, size = 0x400, scoped, tag = 'input window, operand 6, single buffered']
    #allocation9 [shape = 's32[1]{0}', space=sflag, size = 0x4, scoped, tag = 'scoped memory for tpu_custom_call.1']
    %18 = vsyncpa [#allocation4], 0
    %19 = vsyncpa [#allocation6], 0
    %20 = vsyncpa [#allocation9], 0
    loop: start=0, step=1, limit=4
    $region2: #{tpu_custom_call.1} parent=1 // loop_pre_header
      _
    $region3: #{tpu_custom_call.1} parent=1 // loop_header
      %s22 = sphi 0, %s26
      %p23 = scmp.ge.s32.totalorder %s22, 4
      %s32 = sphi 0, %s34
      %s35 = sphi 0, %s32
      %s36 = sphi 0, %s35
      %s52 = sphi 0, %s36
      %s58 = sphi 0, %s60
      %s61 = sphi 0, %s58
      %s62 = sphi 0, %s61
      %s78 = sphi 0, %s62
      %s82 = sphi 0, %s82
      %s84 = sphi 0, %s82
      %s85 = sphi 0, %s84
      %s99 = sphi 0, %s85
      %s103 = sphi 0, %s103
      %s105 = sphi 0, %s103
      %s106 = sphi 0, %s105
      %s120 = sphi 0, %s106
      %s124 = sphi 0, %s124
      %s126 = sphi 0, %s124
      %s127 = sphi 0, %s126
      %s141 = sphi 0, %s127
      %s145 = sphi 0, %s145
      %s147 = sphi 0, %s145
      %s148 = sphi 0, %s147
      %s162 = sphi 0, %s148
      %s166 = sphi 0, %s166
      %s168 = sphi 0, %s166
      %s169 = sphi 0, %s168
      %s183 = sphi 0, %s169
      %s187 = sphi 0, %s187
      %s189 = sphi 0, %s187
      %s190 = sphi 0, %s189
      %s204 = sphi 0, %s190
      %s208 = sphi 0, %s208
      %s210 = sphi 0, %s208
      %s211 = sphi 0, %s210
      %s225 = sphi 0, %s211
      %s229 = sphi 0, %s229
      %s231 = sphi 0, %s229
      %s232 = sphi 0, %s231
      %s246 = sphi 0, %s232
      %s250 = sphi 0, %s250
      %s252 = sphi 0, %s250
      %s253 = sphi 0, %s252
      %s267 = sphi 0, %s253
      %s273 = sphi 0, %s275
      %s276 = sphi 0, %s273
      %s277 = sphi 0, %s276
      %s293 = sphi 0, %s277
    $region4: #{tpu_custom_call.1} parent=1 // loop_header_branch
      %25 = sbr.rel (%p23) target = $region8
    $region5: #{tpu_custom_call.1} parent=1 // loop_body
      %s27 = ssub.s32 %s22, 1
      %s28 = ssub.s32 %s22, 2
      %s29 = sadd.s32 %s22, 1
      %s30 = ssub.s32 %s22, %s29
      %p31 = scmp.eq.s32.totalorder %s30, 0
      %s33 = sadd.s32 %s32, 1
      %s34 = scalar_select %p31, %s32, %s33
      %p37 = pneg %p31
      %p38 = scmp.eq.s32.totalorder %s22, 1
      %p39 = por %p37, %p38
      %p40 = scmp.ne.s32.totalorder %s32, %s35
      %p41 = scmp.eq.s32.totalorder %s22, 0
      %p42 = por %p40, %p41
      %p43 = scmp.ne.s32.totalorder %s32, %s35
      %p44 = scmp.eq.s32.totalorder %s27, 1
      %p45 = por %p43, %p44
      %p46 = scmp.ne.s32.totalorder %s35, %s36
      %p47 = scmp.eq.s32.totalorder %s27, 0
      %p48 = por %p46, %p47
      %p49 = scmp.ne.s32.totalorder %s35, %s36
      %p50 = scmp.eq.s32.totalorder %s28, 1
      %p51 = por %p49, %p50
      %p53 = scmp.ne.s32.totalorder %s36, %s52
      %p54 = scmp.eq.s32.totalorder %s28, 0
      %p55 = por %p53, %p54
      %s56 = ssub.s32 %s22, %s29
      %p57 = scmp.eq.s32.totalorder %s56, 0
      %s59 = sadd.s32 %s58, 1
      %s60 = scalar_select %p57, %s58, %s59
      %p63 = pneg %p57
      %p64 = scmp.eq.s32.totalorder %s22, 1
      %p65 = por %p63, %p64
      %p66 = scmp.ne.s32.totalorder %s58, %s61
      %p67 = scmp.eq.s32.totalorder %s22, 0
      %p68 = por %p66, %p67
      %p69 = scmp.ne.s32.totalorder %s58, %s61
      %p70 = scmp.eq.s32.totalorder %s27, 1
      %p71 = por %p69, %p70
      %p72 = scmp.ne.s32.totalorder %s61, %s62
      %p73 = scmp.eq.s32.totalorder %s27, 0
      %p74 = por %p72, %p73
      %p75 = scmp.ne.s32.totalorder %s61, %s62
      %p76 = scmp.eq.s32.totalorder %s28, 1
      %p77 = por %p75, %p76
      %p79 = scmp.ne.s32.totalorder %s62, %s78
      %p80 = scmp.eq.s32.totalorder %s28, 0
      %p81 = por %p79, %p80
      %s83 = sadd.s32 %s82, 1
      %p86 = scmp.eq.s32.totalorder %s22, 1
      %p87 = scmp.ne.s32.totalorder %s82, %s84
      %p88 = scmp.eq.s32.totalorder %s22, 0
      %p89 = por %p87, %p88
      %p90 = scmp.ne.s32.totalorder %s82, %s84
      %p91 = scmp.eq.s32.totalorder %s27, 1
      %p92 = por %p90, %p91
      %p93 = scmp.ne.s32.totalorder %s84, %s85
      %p94 = scmp.eq.s32.totalorder %s27, 0
      %p95 = por %p93, %p94
      %p96 = scmp.ne.s32.totalorder %s84, %s85
      %p97 = scmp.eq.s32.totalorder %s28, 1
      %p98 = por %p96, %p97
      %p100 = scmp.ne.s32.totalorder %s85, %s99
      %p101 = scmp.eq.s32.totalorder %s28, 0
      %p102 = por %p100, %p101
      %s104 = sadd.s32 %s103, 1
      %p107 = scmp.eq.s32.totalorder %s22, 1
      %p108 = scmp.ne.s32.totalorder %s103, %s105
      %p109 = scmp.eq.s32.totalorder %s22, 0
      %p110 = por %p108, %p109
      %p111 = scmp.ne.s32.totalorder %s103, %s105
      %p112 = scmp.eq.s32.totalorder %s27, 1
      %p113 = por %p111, %p112
      %p114 = scmp.ne.s32.totalorder %s105, %s106
      %p115 = scmp.eq.s32.totalorder %s27, 0
      %p116 = por %p114, %p115
      %p117 = scmp.ne.s32.totalorder %s105, %s106
      %p118 = scmp.eq.s32.totalorder %s28, 1
      %p119 = por %p117, %p118
      %p121 = scmp.ne.s32.totalorder %s106, %s120
      %p122 = scmp.eq.s32.totalorder %s28, 0
      %p123 = por %p121, %p122
      %s125 = sadd.s32 %s124, 1
      %p128 = scmp.eq.s32.totalorder %s22, 1
      %p129 = scmp.ne.s32.totalorder %s124, %s126
      %p130 = scmp.eq.s32.totalorder %s22, 0
      %p131 = por %p129, %p130
      %p132 = scmp.ne.s32.totalorder %s124, %s126
      %p133 = scmp.eq.s32.totalorder %s27, 1
      %p134 = por %p132, %p133
      %p135 = scmp.ne.s32.totalorder %s126, %s127
      %p136 = scmp.eq.s32.totalorder %s27, 0
      %p137 = por %p135, %p136
      %p138 = scmp.ne.s32.totalorder %s126, %s127
      %p139 = scmp.eq.s32.totalorder %s28, 1
      %p140 = por %p138, %p139
      %p142 = scmp.ne.s32.totalorder %s127, %s141
      %p143 = scmp.eq.s32.totalorder %s28, 0
      %p144 = por %p142, %p143
      %s146 = sadd.s32 %s145, 1
      %p149 = scmp.eq.s32.totalorder %s22, 1
      %p150 = scmp.ne.s32.totalorder %s145, %s147
      %p151 = scmp.eq.s32.totalorder %s22, 0
      %p152 = por %p150, %p151
      %p153 = scmp.ne.s32.totalorder %s145, %s147
      %p154 = scmp.eq.s32.totalorder %s27, 1
      %p155 = por %p153, %p154
      %p156 = scmp.ne.s32.totalorder %s147, %s148
      %p157 = scmp.eq.s32.totalorder %s27, 0
      %p158 = por %p156, %p157
      %p159 = scmp.ne.s32.totalorder %s147, %s148
      %p160 = scmp.eq.s32.totalorder %s28, 1
      %p161 = por %p159, %p160
      %p163 = scmp.ne.s32.totalorder %s148, %s162
      %p164 = scmp.eq.s32.totalorder %s28, 0
      %p165 = por %p163, %p164
      %s167 = sadd.s32 %s166, 1
      %p170 = scmp.eq.s32.totalorder %s22, 1
      %p171 = scmp.ne.s32.totalorder %s166, %s168
      %p172 = scmp.eq.s32.totalorder %s22, 0
      %p173 = por %p171, %p172
      %p174 = scmp.ne.s32.totalorder %s166, %s168
      %p175 = scmp.eq.s32.totalorder %s27, 1
      %p176 = por %p174, %p175
      %p177 = scmp.ne.s32.totalorder %s168, %s169
      %p178 = scmp.eq.s32.totalorder %s27, 0
      %p179 = por %p177, %p178
      %p180 = scmp.ne.s32.totalorder %s168, %s169
      %p181 = scmp.eq.s32.totalorder %s28, 1
      %p182 = por %p180, %p181
      %p184 = scmp.ne.s32.totalorder %s169, %s183
      %p185 = scmp.eq.s32.totalorder %s28, 0
      %p186 = por %p184, %p185
      %s188 = sadd.s32 %s187, 1
      %p191 = scmp.eq.s32.totalorder %s22, 1
      %p192 = scmp.ne.s32.totalorder %s187, %s189
      %p193 = scmp.eq.s32.totalorder %s22, 0
      %p194 = por %p192, %p193
      %p195 = scmp.ne.s32.totalorder %s187, %s189
      %p196 = scmp.eq.s32.totalorder %s27, 1
      %p197 = por %p195, %p196
      %p198 = scmp.ne.s32.totalorder %s189, %s190
      %p199 = scmp.eq.s32.totalorder %s27, 0
      %p200 = por %p198, %p199
      %p201 = scmp.ne.s32.totalorder %s189, %s190
      %p202 = scmp.eq.s32.totalorder %s28, 1
      %p203 = por %p201, %p202
      %p205 = scmp.ne.s32.totalorder %s190, %s204
      %p206 = scmp.eq.s32.totalorder %s28, 0
      %p207 = por %p205, %p206
      %s209 = sadd.s32 %s208, 1
      %p212 = scmp.eq.s32.totalorder %s22, 1
      %p213 = scmp.ne.s32.totalorder %s208, %s210
      %p214 = scmp.eq.s32.totalorder %s22, 0
      %p215 = por %p213, %p214
      %p216 = scmp.ne.s32.totalorder %s208, %s210
      %p217 = scmp.eq.s32.totalorder %s27, 1
      %p218 = por %p216, %p217
      %p219 = scmp.ne.s32.totalorder %s210, %s211
      %p220 = scmp.eq.s32.totalorder %s27, 0
      %p221 = por %p219, %p220
      %p222 = scmp.ne.s32.totalorder %s210, %s211
      %p223 = scmp.eq.s32.totalorder %s28, 1
      %p224 = por %p222, %p223
      %p226 = scmp.ne.s32.totalorder %s211, %s225
      %p227 = scmp.eq.s32.totalorder %s28, 0
      %p228 = por %p226, %p227
      %s230 = sadd.s32 %s229, 1
      %p233 = scmp.eq.s32.totalorder %s22, 1
      %p234 = scmp.ne.s32.totalorder %s229, %s231
      %p235 = scmp.eq.s32.totalorder %s22, 0
      %p236 = por %p234, %p235
      %p237 = scmp.ne.s32.totalorder %s229, %s231
      %p238 = scmp.eq.s32.totalorder %s27, 1
      %p239 = por %p237, %p238
      %p240 = scmp.ne.s32.totalorder %s231, %s232
      %p241 = scmp.eq.s32.totalorder %s27, 0
      %p242 = por %p240, %p241
      %p243 = scmp.ne.s32.totalorder %s231, %s232
      %p244 = scmp.eq.s32.totalorder %s28, 1
      %p245 = por %p243, %p244
      %p247 = scmp.ne.s32.totalorder %s232, %s246
      %p248 = scmp.eq.s32.totalorder %s28, 0
      %p249 = por %p247, %p248
      %s251 = sadd.s32 %s250, 1
      %p254 = scmp.eq.s32.totalorder %s22, 1
      %p255 = scmp.ne.s32.totalorder %s250, %s252
      %p256 = scmp.eq.s32.totalorder %s22, 0
      %p257 = por %p255, %p256
      %p258 = scmp.ne.s32.totalorder %s250, %s252
      %p259 = scmp.eq.s32.totalorder %s27, 1
      %p260 = por %p258, %p259
      %p261 = scmp.ne.s32.totalorder %s252, %s253
      %p262 = scmp.eq.s32.totalorder %s27, 0
      %p263 = por %p261, %p262
      %p264 = scmp.ne.s32.totalorder %s252, %s253
      %p265 = scmp.eq.s32.totalorder %s28, 1
      %p266 = por %p264, %p265
      %p268 = scmp.ne.s32.totalorder %s253, %s267
      %p269 = scmp.eq.s32.totalorder %s28, 0
      %p270 = por %p268, %p269
      %s271 = ssub.s32 %s22, %s29
      %p272 = scmp.eq.s32.totalorder %s271, 0
      %s274 = sadd.s32 %s273, 1
      %s275 = scalar_select %p272, %s273, %s274
      %p278 = pneg %p272
      %p279 = scmp.eq.s32.totalorder %s22, 1
      %p280 = por %p278, %p279
      %p281 = scmp.ne.s32.totalorder %s273, %s276
      %p282 = scmp.eq.s32.totalorder %s22, 0
      %p283 = por %p281, %p282
      %p284 = scmp.ne.s32.totalorder %s273, %s276
      %p285 = scmp.eq.s32.totalorder %s27, 1
      %p286 = por %p284, %p285
      %p287 = scmp.ne.s32.totalorder %s276, %s277
      %p288 = scmp.eq.s32.totalorder %s27, 0
      %p289 = por %p287, %p288
      %p290 = scmp.ne.s32.totalorder %s276, %s277
      %p291 = scmp.eq.s32.totalorder %s28, 1
      %p292 = por %p290, %p291
      %p294 = scmp.ne.s32.totalorder %s277, %s293
      %p295 = scmp.eq.s32.totalorder %s28, 0
      %p296 = por %p294, %p295
      %p297 = scmp.le.s32.totalorder 1, %s22
      %p298 = scmp.lt.s32.totalorder %s22, 3
      %p299 = pnand %p297, %p298
      %p300 = pneg %p299
      // Predicated region
      $region9: #{tpu_custom_call.1} parent=5 // pred_check
        _
      $region10: #{tpu_custom_call.1} parent=5 // pred_check_branch
        %302 = sbr.rel (%p299) target = $region12
      $region11: #{tpu_custom_call.1} parent=5 // pred_region
        %s303 = ssub.s32 %s22, 1
        // Predicated region
        $region13: #{tpu_custom_call.1} parent=11 // pred_check
          %p304 = pneg %p95
        $region14: #{tpu_custom_call.1} parent=11 // pred_check_branch
          %306 = sbr.rel (%p304) target = $region16
        $region15: #{tpu_custom_call.1} parent=11 // pred_region
          _
        $region16: #{tpu_custom_call.1} parent=11 // pred_fallthru
          _
        // Predicated region
        $region17: #{tpu_custom_call.1} parent=11 // pred_check
          %p307 = pneg %p116
        $region18: #{tpu_custom_call.1} parent=11 // pred_check_branch
          %309 = sbr.rel (%p307) target = $region20
        $region19: #{tpu_custom_call.1} parent=11 // pred_region
          %s311 = ssub.s32 16, 16
          %312 = vsyncadd [#allocation4], %s311
          %s314 = sshll.u32 [#allocation3], 4
          %s315 = int_to_ptr.vmem [resolvable:$true] %s314
          %317 = dma.hbm_to_vmem [thread:$0]  %s3, 16, %s315, [#allocation4]
        $region20: #{tpu_custom_call.1} parent=11 // pred_fallthru
          _
        // Predicated region
        $region21: #{tpu_custom_call.1} parent=11 // pred_check
          %p318 = pneg %p137
        $region22: #{tpu_custom_call.1} parent=11 // pred_check_branch
          %320 = sbr.rel (%p318) target = $region24
        $region23: #{tpu_custom_call.1} parent=11 // pred_region
          %s322 = ssub.s32 1024, 1024
          %323 = vsyncadd [#allocation6], %s322
          %s324 = sshll.u32 [#allocation5], 4
          %s325 = int_to_ptr.vmem [resolvable:$true] %s324
          %330 = dma.hbm_to_vmem [thread:$0]  %s4, 1024, %s325, [#allocation6], 64, 64, 4
        $region24: #{tpu_custom_call.1} parent=11 // pred_fallthru
          _
        // Predicated region
        $region25: #{tpu_custom_call.1} parent=11 // pred_check
          %p331 = pneg %p158
        $region26: #{tpu_custom_call.1} parent=11 // pred_check_branch
          %333 = sbr.rel (%p331) target = $region28
        $region27: #{tpu_custom_call.1} parent=11 // pred_region
          %s335 = ssub.s32 32, 32
          %336 = vsyncadd [#allocation6], %s335
          %s338 = sshll.u32 [#allocation7], 4
          %s339 = int_to_ptr.vmem [resolvable:$true] %s338
          %341 = dma.hbm_to_vmem [thread:$0]  %s5, 32, %s339, [#allocation6]
        $region28: #{tpu_custom_call.1} parent=11 // pred_fallthru
          _
        // Predicated region
        $region29: #{tpu_custom_call.1} parent=11 // pred_check
          %p342 = pneg %p179
        $region30: #{tpu_custom_call.1} parent=11 // pred_check_branch
          %344 = sbr.rel (%p342) target = $region32
        $region31: #{tpu_custom_call.1} parent=11 // pred_region
          %s346 = ssub.s32 16, 16
          %347 = vsyncadd [#allocation9], %s346
          %s349 = sshll.u32 [#allocation8], 4
          %s350 = int_to_ptr.vmem [resolvable:$true] %s349
          %352 = dma.hbm_to_vmem [thread:$0]  %s6, 16, %s350, [#allocation9]
        $region32: #{tpu_custom_call.1} parent=11 // pred_fallthru
          _
        // Predicated region
        $region33: #{tpu_custom_call.1} parent=11 // pred_check
          %p353 = pneg %p200
        $region34: #{tpu_custom_call.1} parent=11 // pred_check_branch
          %355 = sbr.rel (%p353) target = $region36
        $region35: #{tpu_custom_call.1} parent=11 // pred_region
          _
        $region36: #{tpu_custom_call.1} parent=11 // pred_fallthru
          _
        // Predicated region
        $region37: #{tpu_custom_call.1} parent=11 // pred_check
          %p356 = pneg %p221
        $region38: #{tpu_custom_call.1} parent=11 // pred_check_branch
          %358 = sbr.rel (%p356) target = $region40
        $region39: #{tpu_custom_call.1} parent=11 // pred_region
          _
        $region40: #{tpu_custom_call.1} parent=11 // pred_fallthru
          _
        // Predicated region
        $region41: #{tpu_custom_call.1} parent=11 // pred_check
          %p359 = pneg %p242
        $region42: #{tpu_custom_call.1} parent=11 // pred_check_branch
          %361 = sbr.rel (%p359) target = $region44
        $region43: #{tpu_custom_call.1} parent=11 // pred_region
          _
        $region44: #{tpu_custom_call.1} parent=11 // pred_fallthru
          _
        // Predicated region
        $region45: #{tpu_custom_call.1} parent=11 // pred_check
          %p362 = pneg %p263
        $region46: #{tpu_custom_call.1} parent=11 // pred_check_branch
          %364 = sbr.rel (%p362) target = $region48
        $region47: #{tpu_custom_call.1} parent=11 // pred_region
          _
        $region48: #{tpu_custom_call.1} parent=11 // pred_fallthru
          _
      $region12: #{tpu_custom_call.1} parent=5 // pred_fallthru
        _
      %p365 = scmp.lt.s32.totalorder %s22, 2
      // Predicated region
      $region49: #{tpu_custom_call.1} parent=5 // pred_check
        %p366 = pneg %p365
      $region50: #{tpu_custom_call.1} parent=5 // pred_check_branch
        %368 = sbr.rel (%p366) target = $region52
      $region51: #{tpu_custom_call.1} parent=5 // pred_region
        // Predicated region
        $region53: #{tpu_custom_call.1} parent=51 // pred_check
          %p369 = pneg %p42
        $region54: #{tpu_custom_call.1} parent=51 // pred_check_branch
          %371 = sbr.rel (%p369) target = $region56
        $region55: #{tpu_custom_call.1} parent=51 // pred_region
          %s372 = smul.u32 2, %s22
          %p373 = scmp.lt.s32.totalorder %s372, 3
          %s374 = scalar_select %p373, %s372, 3
          %s375 = smul.addr %s374, 4
          %s376 = scalar_lea.vmem %s0, %s375
          %s377 = smul.u32 2, %s22
        $region56: #{tpu_custom_call.1} parent=51 // pred_fallthru
          _
        // Predicated region
        $region57: #{tpu_custom_call.1} parent=51 // pred_check
          %p378 = pneg %p68
        $region58: #{tpu_custom_call.1} parent=51 // pred_check_branch
          %380 = sbr.rel (%p378) target = $region60
        $region59: #{tpu_custom_call.1} parent=51 // pred_region
          %s381 = smul.u32 2, %s22
          %p382 = scmp.lt.s32.totalorder %s381, 3
          %s383 = scalar_select %p382, %s381, 3
          %s384 = smul.addr %s383, 4
          %s385 = scalar_lea.vmem %s1, %s384
          %s386 = smul.u32 2, %s22
        $region60: #{tpu_custom_call.1} parent=51 // pred_fallthru
          _
      $region52: #{tpu_custom_call.1} parent=5 // pred_fallthru
        _
      %p387 = scmp.le.s32.totalorder 1, %s22
      %p388 = scmp.lt.s32.totalorder %s22, 3
      %p389 = pnand %p387, %p388
      %p390 = pneg %p389
      // Predicated region
      $region61: #{tpu_custom_call.1} parent=5 // pred_check
        _
      $region62: #{tpu_custom_call.1} parent=5 // pred_check_branch
        %392 = sbr.rel (%p389) target = $region64
      $region63: #{tpu_custom_call.1} parent=5 // pred_region
        %s393 = ssub.s32 %s22, 1
        // Predicated region
        $region65: #{tpu_custom_call.1} parent=63 // pred_check
          %p394 = pneg %p116
        $region66: #{tpu_custom_call.1} parent=63 // pred_check_branch
          %396 = sbr.rel (%p394) target = $region68
        $region67: #{tpu_custom_call.1} parent=63 // pred_region
          %397 = dma.done [#allocation4], 16
        $region68: #{tpu_custom_call.1} parent=63 // pred_fallthru
          _
        // Predicated region
        $region69: #{tpu_custom_call.1} parent=63 // pred_check
          %p398 = pneg %p137
        $region70: #{tpu_custom_call.1} parent=63 // pred_check_branch
          %400 = sbr.rel (%p398) target = $region72
        $region71: #{tpu_custom_call.1} parent=63 // pred_region
          %401 = dma.done [#allocation6], 1024
        $region72: #{tpu_custom_call.1} parent=63 // pred_fallthru
          _
        // Predicated region
        $region73: #{tpu_custom_call.1} parent=63 // pred_check
          %p402 = pneg %p158
        $region74: #{tpu_custom_call.1} parent=63 // pred_check_branch
          %404 = sbr.rel (%p402) target = $region76
        $region75: #{tpu_custom_call.1} parent=63 // pred_region
          %405 = dma.done [#allocation6], 32
        $region76: #{tpu_custom_call.1} parent=63 // pred_fallthru
          _
        // Predicated region
        $region77: #{tpu_custom_call.1} parent=63 // pred_check
          %p406 = pneg %p179
        $region78: #{tpu_custom_call.1} parent=63 // pred_check_branch
          %408 = sbr.rel (%p406) target = $region80
        $region79: #{tpu_custom_call.1} parent=63 // pred_region
          %409 = dma.done [#allocation9], 16
        $region80: #{tpu_custom_call.1} parent=63 // pred_fallthru
          _
        %s410 = smul.u32 2, %s27
        %p411 = scmp.lt.s32.totalorder %s410, 3
        %s412 = scalar_select %p411, %s410, 3
        %s413 = smul.addr %s412, 4
        %s414 = scalar_lea.vmem %s0, %s413
        %p415 = pneg %p48
        %p416 = pneg %p45
        %s417 = smul.u32 2, %s27
        %p418 = scmp.lt.s32.totalorder %s417, 3
        %s419 = scalar_select %p418, %s417, 3
        %s420 = smul.addr %s419, 4
        %s421 = scalar_lea.vmem %s1, %s420
        %p422 = pneg %p74
        %p423 = pneg %p71
        %p424 = pneg %p95
        %p425 = pneg %p92
        %p426 = pneg %p116
        %p427 = pneg %p113
        %p428 = pneg %p137
        %p429 = pneg %p134
        %p430 = pneg %p158
        %p431 = pneg %p155
        %p432 = pneg %p179
        %p433 = pneg %p176
        %p434 = pneg %p200
        %p435 = pneg %p197
        %p436 = pneg %p221
        %p437 = pneg %p218
        %p438 = pneg %p242
        %p439 = pneg %p239
        %p440 = pneg %p263
        %p441 = pneg %p260
        %p442 = pneg %p289
        %p443 = pneg %p286
        %s444 = smul.u32 2, %s27
        %p445 = scmp.lt.s32.totalorder %s444, 3
        %s446 = scalar_select %p445, %s444, 3
        %s447 = smul.addr %s446, 8
        %s448 = scalar_lea.vmem %s11, %s447
        %s449 = smul.u32 2, %s27
        %p450 = scmp.lt.s32.totalorder %s449, 3
        %s451 = scalar_select %p450, %s449, 3
        %s452 = smul.addr %s451, 4
        %s453 = scalar_lea.vmem %s0, %s452
        %s454 = smul.u32 2, %s27
        %s455 = smul.u32 2, %s27
        %p456 = scmp.lt.s32.totalorder %s455, 3
        %s457 = scalar_select %p456, %s455, 3
        %s458 = smul.addr %s457, 4
        %s459 = scalar_lea.vmem %s1, %s458
        %s460 = smul.u32 2, %s27
        %s461 = smul.u32 2, %s27
        %p462 = scmp.lt.s32.totalorder %s461, 3
        %s463 = scalar_select %p462, %s461, 3
        %s464 = smul.addr %s463, 8
        %s465 = scalar_lea.vmem %s11, %s464
        %s466 = smul.u32 2, %s27
        %v468 = vld [vmem:[%s453] sm:$0xf]
        %v469 = vld [vmem:[%s453 + $0x4] sm:$0xf]
        %v470 = vld [vmem:[%s459] sm:$0xf]
        %v471 = vld [vmem:[%s459 + $0x4] sm:$0xf]
        %v472 = vld [vmem:[%s2] sm:$0xf]
        %v473 = vld [vmem:[%s2 + $0x4] sm:$0xf]
        %v474 = vld [vmem:[#allocation3] sm:$0x1]
        %v476 = vlaneseq
        %v477 = vshrl.u32 %v476, 7
        %v478 = vsub.s32 0, %v477
        %v479 = vrot.slane %v474, %v478
        %v483 = vunpack.c.l.b16 %v468
        %v484 = vunpack.c.l.b16 %v469
        %v485 = vpack.c.b16 %v484, %v483
        %v488 = vunpack.c.l.b16 %v472
        %v489 = vunpack.c.l.b16 %v473
        %v490 = vpack.c.b16 %v489, %v488
        %vm492 = vcmask 130048
        %v494 = vsel %vm492, %v485, 0
        %496 = vmatprep.subr.bf16.mxu0 0
        %497 = vmatpush1.bf16.msra.mxu0 %v490
        %498 = vmatprep.subr.bf16.mxu0 0
        %499 = vmatpush1.bf16.msra.mxu0 0
        %500 = vmatprep.subr.bf16.mxu0 0
        %501 = vmatpush1.bf16.msra.mxu0 0
        %502 = vmatprep.subr.bf16.mxu0 0
        %503 = vmatpush1.bf16.msra.mxu0 0
        %504 = vmatprep.subr.bf16.mxu0 0
        %505 = vmatpush1.bf16.msra.mxu0 0
        %506 = vmatprep.subr.bf16.mxu0 0
        %507 = vmatpush1.bf16.msra.mxu0 0
        %508 = vmatprep.subr.bf16.mxu0 0
        %509 = vmatpush1.bf16.msra.mxu0 0
        %510 = vmatprep.subr.bf16.mxu0 0
        %511 = vmatpush1.bf16.msra.mxu0 0
        %512 = vmatprep.subr.bf16.mxu0 0
        %513 = vmatpush1.bf16.msra.mxu0 0
        %514 = vmatprep.subr.bf16.mxu0 0
        %515 = vmatpush1.bf16.msra.mxu0 0
        %516 = vmatprep.subr.bf16.mxu0 0
        %517 = vmatpush1.bf16.msra.mxu0 0
        %518 = vmatprep.subr.bf16.mxu0 0
        %519 = vmatpush1.bf16.msra.mxu0 0
        %520 = vmatprep.subr.bf16.mxu0 0
        %521 = vmatpush1.bf16.msra.mxu0 0
        %522 = vmatprep.subr.bf16.mxu0 0
        %523 = vmatpush1.bf16.msra.mxu0 0
        %524 = vmatprep.subr.bf16.mxu0 0
        %525 = vmatpush1.bf16.msra.mxu0 0
        %526 = vmatprep.subr.bf16.mxu0 0
        %527 = vmatpush1.bf16.msra.mxu0 0
        %528 = vmatprep.mubr.bf16.mxu0 0
        %529 = vmatmul.mubr.bf16.gmra.mrb[0].mxu0 %v494
        %v530 = vpop.f32.mrb[0].mxu0
        %v531 = vadd.f32 %v479, %v530
        %v532 = vpop.f32.mrb[0].mxu0
        %v533 = vpop.f32.mrb[0].mxu0
        %v534 = vadd.f32 %v479, %v533
        %v535 = vpop.f32.mrb[0].mxu0
        %536 = vdwg.mxu0
        %v537 = vmax.f32 %v531, 0.0
        %v538 = vmax.f32 %v534, 0.0
        %v539 = vpack.c.bf16 %v538, %v537
        %v540 = vld [vmem:[#allocation5] sm:$0xf]
        %v541 = vld [vmem:[#allocation5 + $0x4] sm:$0xf]
        %v542 = vld [vmem:[#allocation5 + $0x8] sm:$0xf]
        %v543 = vld [vmem:[#allocation5 + $0xc] sm:$0xf]
        %v544 = vld [vmem:[#allocation5 + $0x10] sm:$0xf]
        %v545 = vld [vmem:[#allocation5 + $0x14] sm:$0xf]
        %v546 = vld [vmem:[#allocation5 + $0x18] sm:$0xf]
        %v547 = vld [vmem:[#allocation5 + $0x1c] sm:$0xf]
        %v548 = vld [vmem:[#allocation5 + $0x20] sm:$0xf]
        %v549 = vld [vmem:[#allocation5 + $0x24] sm:$0xf]
        %v550 = vld [vmem:[#allocation5 + $0x28] sm:$0xf]
        %v551 = vld [vmem:[#allocation5 + $0x2c] sm:$0xf]
        %v552 = vld [vmem:[#allocation5 + $0x30] sm:$0xf]
        %v553 = vld [vmem:[#allocation5 + $0x34] sm:$0xf]
        %v554 = vld [vmem:[#allocation5 + $0x38] sm:$0xf]
        %v555 = vld [vmem:[#allocation5 + $0x3c] sm:$0xf]
        %v556 = vld [vmem:[#allocation7] sm:$0x3]
        %v559 = vunpack.c.l.b16 %v470
        %v560 = vunpack.c.l.b16 %v471
        %v561 = vpack.c.b16 %v560, %v559
        %vm562 = vcmask 31744
        %v564 = vsel %vm562, %v561, 0
        %vm566 = vcmask 1041408
        %v568 = vsel %vm566, %v556, 0
        %570 = vmatprep.subr.bf16.mxu0 0
        %571 = vmatpush1.bf16.msra.mxu0 %v568
        %572 = vmatprep.subr.bf16.mxu0 0
        %573 = vmatpush1.bf16.msra.mxu0 0
        %574 = vmatprep.subr.bf16.mxu0 0
        %575 = vmatpush1.bf16.msra.mxu0 0
        %576 = vmatprep.subr.bf16.mxu0 0
        %577 = vmatpush1.bf16.msra.mxu0 0
        %578 = vmatprep.subr.bf16.mxu0 0
        %579 = vmatpush1.bf16.msra.mxu0 0
        %580 = vmatprep.subr.bf16.mxu0 0
        %581 = vmatpush1.bf16.msra.mxu0 0
        %582 = vmatprep.subr.bf16.mxu0 0
        %583 = vmatpush1.bf16.msra.mxu0 0
        %584 = vmatprep.subr.bf16.mxu0 0
        %585 = vmatpush1.bf16.msra.mxu0 0
        %586 = vmatprep.subr.bf16.mxu0 0
        %587 = vmatpush1.bf16.msra.mxu0 0
        %588 = vmatprep.subr.bf16.mxu0 0
        %589 = vmatpush1.bf16.msra.mxu0 0
        %590 = vmatprep.subr.bf16.mxu0 0
        %591 = vmatpush1.bf16.msra.mxu0 0
        %592 = vmatprep.subr.bf16.mxu0 0
        %593 = vmatpush1.bf16.msra.mxu0 0
        %594 = vmatprep.subr.bf16.mxu0 0
        %595 = vmatpush1.bf16.msra.mxu0 0
        %596 = vmatprep.subr.bf16.mxu0 0
        %597 = vmatpush1.bf16.msra.mxu0 0
        %598 = vmatprep.subr.bf16.mxu0 0
        %599 = vmatpush1.bf16.msra.mxu0 0
        %600 = vmatprep.subr.bf16.mxu0 0
        %601 = vmatpush1.bf16.msra.mxu0 0
        %602 = vmatprep.mubr.bf16.mxu0 0
        %603 = vmatmul.mubr.bf16.gmra.mrb[0].mxu0 %v564
        %v604 = vpop.f32.mrb[0].mxu0
        %v605 = vadd.f32 0.0, %v604
        %v606 = vpop.f32.mrb[0].mxu0
        %v607 = vpop.f32.mrb[0].mxu0
        %v608 = vadd.f32 0.0, %v607
        %v609 = vpop.f32.mrb[0].mxu0
        %610 = vdwg.mxu0
        %v627 = vunpack.c.l.b16 %v540
        %v628 = vunpack.c.l.b16 %v541
        %v629 = vunpack.c.l.b16 %v542
        %v630 = vunpack.c.l.b16 %v543
        %v631 = vunpack.c.l.b16 %v544
        %v632 = vunpack.c.l.b16 %v545
        %v633 = vunpack.c.l.b16 %v546
        %v634 = vunpack.c.l.b16 %v547
        %v635 = vunpack.c.l.b16 %v548
        %v636 = vunpack.c.l.b16 %v549
        %v637 = vunpack.c.l.b16 %v550
        %v638 = vunpack.c.l.b16 %v551
        %v639 = vunpack.c.l.b16 %v552
        %v640 = vunpack.c.l.b16 %v553
        %v641 = vunpack.c.l.b16 %v554
        %v642 = vunpack.c.l.b16 %v555
        %v643 = vpack.c.b16 %v628, %v627
        %v644 = vpack.c.b16 %v630, %v629
        %v645 = vpack.c.b16 %v632, %v631
        %v646 = vpack.c.b16 %v634, %v633
        %v647 = vpack.c.b16 %v636, %v635
        %v648 = vpack.c.b16 %v638, %v637
        %v649 = vpack.c.b16 %v640, %v639
        %v650 = vpack.c.b16 %v642, %v641
        %659 = vmatprep.subr.bf16.mxu0 0
        %660 = vmatpush1.bf16.msra.mxu0 %v643
        %661 = vmatprep.subr.bf16.mxu0 0
        %662 = vmatpush1.bf16.msra.mxu0 %v644
        %663 = vmatprep.subr.bf16.mxu0 0
        %664 = vmatpush1.bf16.msra.mxu0 %v645
        %665 = vmatprep.subr.bf16.mxu0 0
        %666 = vmatpush1.bf16.msra.mxu0 %v646
        %667 = vmatprep.subr.bf16.mxu0 0
        %668 = vmatpush1.bf16.msra.mxu0 %v647
        %669 = vmatprep.subr.bf16.mxu0 0
        %670 = vmatpush1.bf16.msra.mxu0 %v648
        %671 = vmatprep.subr.bf16.mxu0 0
        %672 = vmatpush1.bf16.msra.mxu0 %v649
        %673 = vmatprep.subr.bf16.mxu0 0
        %674 = vmatpush1.bf16.msra.mxu0 %v650
        %675 = vmatprep.subr.bf16.mxu0 0
        %676 = vmatpush1.bf16.msra.mxu0 0
        %677 = vmatprep.subr.bf16.mxu0 0
        %678 = vmatpush1.bf16.msra.mxu0 0
        %679 = vmatprep.subr.bf16.mxu0 0
        %680 = vmatpush1.bf16.msra.mxu0 0
        %681 = vmatprep.subr.bf16.mxu0 0
        %682 = vmatpush1.bf16.msra.mxu0 0
        %683 = vmatprep.subr.bf16.mxu0 0
        %684 = vmatpush1.bf16.msra.mxu0 0
        %685 = vmatprep.subr.bf16.mxu0 0
        %686 = vmatpush1.bf16.msra.mxu0 0
        %687 = vmatprep.subr.bf16.mxu0 0
        %688 = vmatpush1.bf16.msra.mxu0 0
        %689 = vmatprep.subr.bf16.mxu0 0
        %690 = vmatpush1.bf16.msra.mxu0 0
        %691 = vmatprep.mubr.bf16.mxu0 0
        %692 = vmatmul.mubr.bf16.gmra.mrb[0].mxu0 %v539
        %v693 = vpop.f32.mrb[0].mxu0
        %v694 = vadd.f32 %v605, %v693
        %v695 = vpop.f32.mrb[0].mxu0
        %v696 = vpop.f32.mrb[0].mxu0
        %v697 = vadd.f32 %v608, %v696
        %v698 = vpop.f32.mrb[0].mxu0
        %699 = vdwg.mxu0
        %v700 = vld [vmem:[#allocation8] sm:$0x1]
        %v702 = vlaneseq
        %v703 = vshrl.u32 %v702, 7
        %v704 = vsub.s32 0, %v703
        %v705 = vrot.slane %v700, %v704
        %v707 = vadd.f32 %v694, %v705
        %v708 = vadd.f32 %v697, %v705
        %v709 = vmax.f32 %v707, 0.0
        %v710 = vmax.f32 %v708, 0.0
        %v711 = vpack.c.bf16 %v710, %v709
        %v712 = vld [vmem:[%s7] sm:$0xf]
        %v713 = vld [vmem:[%s7 + $0x4] sm:$0xf]
        %v714 = vld [vmem:[%s7 + $0x8] sm:$0xf]
        %v715 = vld [vmem:[%s7 + $0xc] sm:$0xf]
        %v716 = vld [vmem:[%s7 + $0x10] sm:$0xf]
        %v717 = vld [vmem:[%s7 + $0x14] sm:$0xf]
        %v718 = vld [vmem:[%s7 + $0x18] sm:$0xf]
        %v719 = vld [vmem:[%s7 + $0x1c] sm:$0xf]
        %v720 = vld [vmem:[%s7 + $0x20] sm:$0xf]
        %v721 = vld [vmem:[%s7 + $0x24] sm:$0xf]
        %v722 = vld [vmem:[%s7 + $0x28] sm:$0xf]
        %v723 = vld [vmem:[%s7 + $0x2c] sm:$0xf]
        %v724 = vld [vmem:[%s7 + $0x30] sm:$0xf]
        %v725 = vld [vmem:[%s7 + $0x34] sm:$0xf]
        %v726 = vld [vmem:[%s7 + $0x38] sm:$0xf]
        %v727 = vld [vmem:[%s7 + $0x3c] sm:$0xf]
        %v728 = vld [vmem:[%s8] sm:$0x1]
        %v730 = vlaneseq
        %v731 = vshrl.u32 %v730, 7
        %v732 = vsub.s32 0, %v731
        %v733 = vrot.slane %v728, %v732
        %v751 = vunpack.c.l.b16 %v712
        %v752 = vunpack.c.l.b16 %v713
        %v753 = vunpack.c.l.b16 %v714
        %v754 = vunpack.c.l.b16 %v715
        %v755 = vunpack.c.l.b16 %v716
        %v756 = vunpack.c.l.b16 %v717
        %v757 = vunpack.c.l.b16 %v718
        %v758 = vunpack.c.l.b16 %v719
        %v759 = vunpack.c.l.b16 %v720
        %v760 = vunpack.c.l.b16 %v721
        %v761 = vunpack.c.l.b16 %v722
        %v762 = vunpack.c.l.b16 %v723
        %v763 = vunpack.c.l.b16 %v724
        %v764 = vunpack.c.l.b16 %v725
        %v765 = vunpack.c.l.b16 %v726
        %v766 = vunpack.c.l.b16 %v727
        %v767 = vpack.c.b16 %v752, %v751
        %v768 = vpack.c.b16 %v754, %v753
        %v769 = vpack.c.b16 %v756, %v755
        %v770 = vpack.c.b16 %v758, %v757
        %v771 = vpack.c.b16 %v760, %v759
        %v772 = vpack.c.b16 %v762, %v761
        %v773 = vpack.c.b16 %v764, %v763
        %v774 = vpack.c.b16 %v766, %v765
        %783 = vmatprep.subr.bf16.mxu0 0
        %784 = vmatpush1.bf16.msra.mxu0 %v767
        %785 = vmatprep.subr.bf16.mxu0 0
        %786 = vmatpush1.bf16.msra.mxu0 %v768
        %787 = vmatprep.subr.bf16.mxu0 0
        %788 = vmatpush1.bf16.msra.mxu0 %v769
        %789 = vmatprep.subr.bf16.mxu0 0
        %790 = vmatpush1.bf16.msra.mxu0 %v770
        %791 = vmatprep.subr.bf16.mxu0 0
        %792 = vmatpush1.bf16.msra.mxu0 %v771
        %793 = vmatprep.subr.bf16.mxu0 0
        %794 = vmatpush1.bf16.msra.mxu0 %v772
        %795 = vmatprep.subr.bf16.mxu0 0
        %796 = vmatpush1.bf16.msra.mxu0 %v773
        %797 = vmatprep.subr.bf16.mxu0 0
        %798 = vmatpush1.bf16.msra.mxu0 %v774
        %799 = vmatprep.subr.bf16.mxu0 0
        %800 = vmatpush1.bf16.msra.mxu0 0
        %801 = vmatprep.subr.bf16.mxu0 0
        %802 = vmatpush1.bf16.msra.mxu0 0
        %803 = vmatprep.subr.bf16.mxu0 0
        %804 = vmatpush1.bf16.msra.mxu0 0
        %805 = vmatprep.subr.bf16.mxu0 0
        %806 = vmatpush1.bf16.msra.mxu0 0
        %807 = vmatprep.subr.bf16.mxu0 0
        %808 = vmatpush1.bf16.msra.mxu0 0
        %809 = vmatprep.subr.bf16.mxu0 0
        %810 = vmatpush1.bf16.msra.mxu0 0
        %811 = vmatprep.subr.bf16.mxu0 0
        %812 = vmatpush1.bf16.msra.mxu0 0
        %813 = vmatprep.subr.bf16.mxu0 0
        %814 = vmatpush1.bf16.msra.mxu0 0
        %815 = vmatprep.mubr.bf16.mxu0 0
        %816 = vmatmul.mubr.bf16.gmra.mrb[0].mxu0 %v711
        %v817 = vpop.f32.mrb[0].mxu0
        %v818 = vadd.f32 %v733, %v817
        %v819 = vpop.f32.mrb[0].mxu0
        %v820 = vpop.f32.mrb[0].mxu0
        %v821 = vadd.f32 %v733, %v820
        %v822 = vpop.f32.mrb[0].mxu0
        %823 = vdwg.mxu0
        %v824 = vmax.f32 %v818, 0.0
        %v825 = vmax.f32 %v821, 0.0
        %v826 = vld [vmem:[%s9] sm:$0x1]
        %v828 = vlaneseq
        %v829 = vshrl.u32 %v828, 7
        %v830 = vsub.s32 0, %v829
        %v831 = vrot.slane %v826, %v830
        %v833 = vmul.f32 %v824, %v831
        %v834 = vmul.f32 %v825, %v831
        %835 = vadd.xlane.f32.xlu0 %v833
        %v836 = vpop.xlane.xlu0 %835
        %837 = vadd.xlane.f32.xlu0 %v834
        %v838 = vpop.xlane.xlu0 %837
        %v839 = vld [vmem:[#allocation2] sm:$0x1]
        %v841 = vlaneseq
        %v842 = vshrl.u32 %v841, 7
        %v843 = vsub.s32 0, %v842
        %v844 = vrot.slane %v839, %v843
        %v846 = vadd.f32 %v836, %v844
        %v847 = vadd.f32 %v838, %v844
        %vm848 = vcmask 7168
        %849 = vst.msk [vmem:[%s465] sm:$0xff] %vm848, %v846
        %850 = vst.msk [vmem:[%s465 + $0x8] sm:$0xff] %vm848, %v847
        %s851 = smul.u32 2, %s27
        %p852 = scmp.lt.s32.totalorder %s851, 3
        %s853 = scalar_select %p852, %s851, 3
        %s854 = smul.addr %s853, 8
        %s855 = scalar_lea.vmem %s11, %s854
        // Predicated region
        $region81: #{tpu_custom_call.1} parent=63 // pred_check
          %p856 = pneg %p286
        $region82: #{tpu_custom_call.1} parent=63 // pred_check_branch
          %858 = sbr.rel (%p856) target = $region84
        $region83: #{tpu_custom_call.1} parent=63 // pred_region
          %s859 = smul.u32 2, %s27
        $region84: #{tpu_custom_call.1} parent=63 // pred_fallthru
          _
      $region64: #{tpu_custom_call.1} parent=5 // pred_fallthru
        _
      %p860 = scmp.le.s32.totalorder 2, %s22
      // Predicated region
      $region85: #{tpu_custom_call.1} parent=5 // pred_check
        %p861 = pneg %p860
      $region86: #{tpu_custom_call.1} parent=5 // pred_check_branch
        %863 = sbr.rel (%p861) target = $region88
      $region87: #{tpu_custom_call.1} parent=5 // pred_region
        %s864 = ssub.s32 %s22, 2
        // Predicated region
        $region89: #{tpu_custom_call.1} parent=87 // pred_check
          %p865 = pneg %p292
        $region90: #{tpu_custom_call.1} parent=87 // pred_check_branch
          %867 = sbr.rel (%p865) target = $region92
        $region91: #{tpu_custom_call.1} parent=87 // pred_region
          %s868 = smul.u32 2, %s28
          %p869 = scmp.lt.s32.totalorder %s868, 3
          %s870 = scalar_select %p869, %s868, 3
          %s871 = smul.addr %s870, 8
          %s872 = scalar_lea.vmem %s11, %s871
        $region92: #{tpu_custom_call.1} parent=87 // pred_fallthru
          _
      $region88: #{tpu_custom_call.1} parent=5 // pred_fallthru
        _
    $region6: #{tpu_custom_call.1} parent=1 // loop_footer
      %s26 = sadd.s32 1, %s22
    $region7: #{tpu_custom_call.1} parent=1 // loop_footer_branch
      %21 = sbr.rel target = $region3
    $region8: #{tpu_custom_call.1} parent=1 // loop_exit
      _
    %873 = vsyncpa [#allocation4], 1
    %s874 = scalar_lea.sflag [#allocation4], 1
    %875 = vsyncpa %s874, 1
    %876 = vsyncpa [#allocation6], 1
    %877 = vsyncpa [#allocation9], 1

</llo_original>
